<compile_context>
chip_gen: v6e
topology: v6e:2x2x1
jax: 0.10.0
libtpu: 0.0.40
codegen_flags: <defaults>
</compile_context>

<pallas_src>
import functools
import math

import jax
import jax.numpy as jnp
from jax.experimental import pallas as pl
from jax.experimental.pallas import tpu as pltpu


def _round_up(v, m):
    return ((v + m - 1) // m) * m


def _vmem_limit_bytes():
    """Generation-aware scoped-VMEM limit (~half of physical capacity)."""
    try:
        cap = pltpu.get_tpu_info().vmem_capacity_bytes
    except Exception:
        cap = 64 << 20                     # conservative (v7x-like) fallback
    return max(32 << 20, min(cap // 2, 64 << 20))


def _choose_tile_rows(n, c, x_bytes, row_align, max_tile_rows, budget_bytes):
    """Largest row tile whose *total* VMEM footprint fits the budget.

    Accounts for the double-buffered x tile, the double-buffered (rows,1) int32
    target tile (lane-padded to 128 lanes in VMEM) and the single-buffered
    (rows,1) f32 accumulator scratch.
    """
    lane_c = _round_up(max(c, 1), 128)
    bytes_per_row = (2 * lane_c * x_bytes   # x tile, double buffered
                     + 2 * 128 * 4          # target tile (lane padded), double buffered
                     + 128 * 4)             # accumulator scratch
    rows = budget_bytes // bytes_per_row
    rows = min(rows, max_tile_rows)
    rows = max(row_align, (rows // row_align) * row_align)
    if n <= rows:
        return n                            # single full-extent block is always legal
    return rows


def _focal_loss_kernel(x_ref, t_ref, out_ref, acc_ref, *,
                       gamma, eps, n_rows, tile_rows, tiles_per_split, needs_mask):
    i = pl.program_id(1)                    # position along the "arbitrary" row-tile axis

    @pl.when(i == 0)
    def _init():
        acc_ref[...] = jnp.zeros_like(acc_ref)

    x = x_ref[...].astype(jnp.float32)      # (tile_rows, C) logits
    t = t_ref[...]                          # (tile_rows, 1) int32 class ids
    tn, c = x.shape

    # Stable log-sum-exp over the class (lane) axis.
    m = jnp.max(x, axis=1, keepdims=True)                      # (tn, 1)
    lse = jnp.log(jnp.sum(jnp.exp(x - m), axis=1, keepdims=True))

    # Gather the target logit via a masked lane max (no dynamic gather on TPU).
    cls = jax.lax.broadcasted_iota(jnp.int32, (tn, c), 1)
    x_t = jnp.max(jnp.where(cls == t, x, -jnp.inf), axis=1, keepdims=True)

    # log-softmax at the target class; clamp directly in log space (equivalent
    # to the reference's clamp on the gathered probability).
    logp_t = (x_t - m) - lse
    logp_t = jnp.clip(logp_t, math.log(eps), math.log1p(-eps))

    # Focal modulation specialized on the trace-time gamma.
    if gamma == 0.0:
        loss = -logp_t
    else:
        p_t = jnp.exp(logp_t)
        omp = 1.0 - p_t
        if gamma == 1.0:
            mod = omp
        elif gamma == 2.0:
            mod = omp * omp
        else:
            mod = jnp.power(omp, gamma)
        loss = -logp_t * mod

    if needs_mask:
        # Zero rows past N (partial last tile) and whole phantom tiles
        # (odd tile count split across two cores).
        g = pl.program_id(0) * tiles_per_split + i
        row = jax.lax.broadcasted_iota(jnp.int32, (tn, 1), 0) + g * tile_rows
        loss = jnp.where(row < n_rows, loss, 0.0)

    acc_ref[...] += loss                    # per-row partials; no per-step scalar reduce

    @pl.when(i == pl.num_programs(1) - 1)
    def _finalize():
        out_ref[...] = jnp.reshape(jnp.sum(acc_ref[...]), (1, 1, 1))


def focal_loss_without_onehot(x, target, gamma=0.0, eps=1e-7, max_tile_rows=8192):
    """x: (N, C) logits (f32 or bf16); target: (N,) int labels -> scalar f32 loss sum."""
    x = jnp.asarray(x)
    if x.dtype != jnp.bfloat16 and x.dtype != jnp.float32:
        x = x.astype(jnp.float32)
    n, c = x.shape
    t2 = jnp.asarray(target, jnp.int32).reshape(n, 1)

    x_bytes = 2 if x.dtype == jnp.bfloat16 else 4
    row_align = 16 if x.dtype == jnp.bfloat16 else 8
    vmem_limit = _vmem_limit_bytes()
    budget = (vmem_limit * 3) // 4          # headroom for compiler-internal scratch

    tile_rows = _choose_tile_rows(n, c, x_bytes, row_align, max_tile_rows, budget)
    total_tiles = (n + tile_rows - 1) // tile_rows

    # Always split row tiles over both TensorCores when there is more than one
    # tile (v7x megacore); harmless sequential no-op on single-core chips.
    splits = 2 if total_tiles >= 2 else 1
    tps = (total_tiles + splits - 1) // splits
    needs_mask = (n % tile_rows != 0) or (splits * tps != total_tiles)
    last_tile = total_tiles - 1

    def row_tile_map(s, i):
        # Clamp phantom tiles (odd tile count) onto the last real tile; their
        # rows are masked to zero inside the kernel.
        return (jnp.minimum(s * tps + i, last_tile), 0)

    kernel = functools.partial(
        _focal_loss_kernel,
        gamma=float(gamma), eps=float(eps), n_rows=n,
        tile_rows=tile_rows, tiles_per_split=tps, needs_mask=needs_mask)

    grid_spec = pltpu.PrefetchScalarGridSpec(
        num_scalar_prefetch=0,
        grid=(splits, tps),
        in_specs=[
            pl.BlockSpec((tile_rows, c), row_tile_map),
            pl.BlockSpec((tile_rows, 1), row_tile_map),
        ],
        # 3-D output so the last two block dims equal the full array dims.
        out_specs=pl.BlockSpec((1, 1, 1), lambda s, i: (s, 0, 0)),
        scratch_shapes=[pltpu.VMEM((tile_rows, 1), jnp.float32)],
    )

    partials = pl.pallas_call(
        kernel,
        out_shape=jax.ShapeDtypeStruct((splits, 1, 1), jnp.float32),
        grid_spec=grid_spec,
        compiler_params=pltpu.CompilerParams(
            dimension_semantics=("parallel", "arbitrary"),
            vmem_limit_bytes=vmem_limit,
        ),
    )(x, t2)
    return jnp.sum(partials)


def _reference(x, target, gamma=0.0, eps=1e-7):
    p = jax.nn.softmax(x, axis=1)
    p = jnp.clip(p, eps, 1.0 - eps)
    logp = jnp.log(p)
    p_t = jnp.take_along_axis(p, target[:, None], axis=1)[:, 0]
    logp_t = jnp.take_along_axis(logp, target[:, None], axis=1)[:, 0]
    return jnp.sum(-logp_t * (1.0 - p_t) ** gamma)


if __name__ == "__main__":
    k1, k2, k3, k4 = jax.random.split(jax.random.PRNGKey(0), 4)
    ok = True

    # Small case matching the module's typical (batch, num_classes) usage.
    N, C = 8, 16
    x = jax.random.normal(k1, (N, C), dtype=jnp.float32) * 3.0
    target = jax.random.randint(k2, (N,), 0, C, dtype=jnp.int32)
    for gamma in (0.0, 2.0):            # module default gamma=0; also exercise gamma=2
        got = jax.block_until_ready(focal_loss_without_onehot(x, target, gamma=gamma))
        want = jax.block_until_ready(_reference(x, target, gamma=gamma))
        if not jnp.allclose(got, want, rtol=1e-5, atol=1e-5):
            ok = False
            print(f"MISMATCH gamma={gamma}: got {got}, want {want}")

    # Tiled path with an ODD tile count: exercises the 2-core split with a
    # phantom tile plus a partial last tile (200 rows, 72-row tiles -> 3 tiles).
    N2, C2 = 200, 24
    x2 = jax.random.normal(k3, (N2, C2), dtype=jnp.float32) * 3.0
    target2 = jax.random.randint(k4, (N2,), 0, C2, dtype=jnp.int32)
    got2 = jax.block_until_ready(
        focal_loss_without_onehot(x2, target2, gamma=2.0, max_tile_rows=72))
    want2 = jax.block_until_ready(_reference(x2, target2, gamma=2.0))
    if not jnp.allclose(got2, want2, rtol=1e-5, atol=1e-4):
        ok = False
        print(f"MISMATCH tiled/odd path: got {got2}, want {want2}")

    # bf16 input path (no wrapper upcast; 16-row alignment), even tile count.
    x3 = x2.astype(jnp.bfloat16)
    got3 = jax.block_until_ready(
        focal_loss_without_onehot(x3, target2, gamma=2.0, max_tile_rows=64))
    want3 = jax.block_until_ready(_reference(x3.astype(jnp.float32), target2, gamma=2.0))
    if not jnp.allclose(got3, want3, rtol=1e-5, atol=1e-3):
        ok = False
        print(f"MISMATCH bf16 path: got {got3}, want {want3}")

    if ok:
        print("KERNEL_OK")
</pallas_src>

<mosaic_0001>
module attributes {stable_mosaic.version = 11 : i64} {
  func.func @_focal_loss_kernel(%arg0: i32, %arg1: i32, %arg2: memref<8x16xf32, #tpu.memory_space<vmem>>, %arg3: memref<8x1xi32, #tpu.memory_space<vmem>>, %arg4: memref<1x1x1xf32, #tpu.memory_space<vmem>>, %arg5: memref<8x1xf32, #tpu.memory_space<vmem>>) attributes {dimension_semantics = [#tpu.dimension_semantics<parallel>, #tpu.dimension_semantics<arbitrary>], iteration_bounds = array<i64: 1, 1>, scalar_prefetch = 0 : i64, scratch_operands = 1 : i64, tpu.core_type = #tpu.core_type<tc>, window_params = [{transform_indices = @transform_0, window_bounds = array<i64: 8, 16>}, {transform_indices = @transform_1, window_bounds = array<i64: 8, 1>}, {transform_indices = @transform_2, window_bounds = array<i64: 1, 1, 1>}]} {
    %c0_i32 = arith.constant 0 : i32
    %0 = arith.cmpi eq, %arg1, %c0_i32 : i32
    %1 = arith.extui %0 : i1 to i32
    %c0_i32_0 = arith.constant 0 : i32
    %2 = arith.cmpi ne, %1, %c0_i32_0 : i32
    scf.if %2 {
      %cst_16 = arith.constant 0.000000e+00 : f32
      %34 = vector.broadcast %cst_16 : f32 to vector<8x1xf32>
      %c0_17 = arith.constant 0 : index
      %c0_18 = arith.constant 0 : index
      %35 = vector.load %arg5[%c0_17, %c0_18] : memref<8x1xf32, #tpu.memory_space<vmem>>, vector<8x1xf32>
      tpu.vector_store %arg5[%c0_17, %c0_18], %34 {strides = array<i32>} : memref<8x1xf32, #tpu.memory_space<vmem>>, vector<8x1xf32>,
    } else {
    }
    %c0 = arith.constant 0 : index
    %c0_1 = arith.constant 0 : index
    %3 = vector.load %arg2[%c0, %c0_1] : memref<8x16xf32, #tpu.memory_space<vmem>>, vector<8x16xf32>
    %c0_2 = arith.constant 0 : index
    %c0_3 = arith.constant 0 : index
    %4 = vector.load %arg3[%c0_2, %c0_3] : memref<8x1xi32, #tpu.memory_space<vmem>>, vector<8x1xi32>
    %cst = arith.constant dense<0xFF800000> : vector<8xf32>
    %5 = vector.multi_reduction <maximumf>, %3, %cst [1] : vector<8x16xf32> to vector<8xf32>
    %6 = vector.shape_cast %5 : vector<8xf32> to vector<8x1xf32>
    %7 = vector.broadcast %6 : vector<8x1xf32> to vector<8x16xf32>
    %8 = arith.subf %3, %7 : vector<8x16xf32>
    %9 = math.exp %8 : vector<8x16xf32>
    %cst_4 = arith.constant dense<0.000000e+00> : vector<8xf32>
    %10 = vector.multi_reduction <add>, %9, %cst_4 [1] : vector<8x16xf32> to vector<8xf32>
    %11 = vector.shape_cast %10 : vector<8xf32> to vector<8x1xf32>
    %12 = math.log %11 : vector<8x1xf32>
    %13 = tpu.iota {dimensions = array<i32: 1>} : vector<8x16xi32>
    %14 = vector.broadcast %4 : vector<8x1xi32> to vector<8x16xi32>
    %15 = arith.cmpi eq, %13, %14 : vector<8x16xi32>
    %cst_5 = arith.constant 0xFF800000 : f32
    %16 = vector.broadcast %cst_5 : f32 to vector<8x16xf32>
    %17 = arith.select %15, %3, %16 : vector<8x16xi1>, vector<8x16xf32>
    %cst_6 = arith.constant dense<0xFF800000> : vector<8xf32>
    %18 = vector.multi_reduction <maximumf>, %17, %cst_6 [1] : vector<8x16xf32> to vector<8xf32>
    %19 = vector.shape_cast %18 : vector<8xf32> to vector<8x1xf32>
    %20 = arith.subf %19, %6 : vector<8x1xf32>
    %21 = arith.subf %20, %12 : vector<8x1xf32>
    %cst_7 = arith.constant -16.1180954 : f32
    %cst_8 = arith.constant -1.00000008E-7 : f32
    %22 = vector.broadcast %cst_7 : f32 to vector<8x1xf32>
    %23 = arith.maximumf %22, %21 : vector<8x1xf32>
    %24 = vector.broadcast %cst_8 : f32 to vector<8x1xf32>
    %25 = arith.minimumf %24, %23 : vector<8x1xf32>
    %cst_9 = arith.constant 0.000000e+00 : f32
    %26 = vector.broadcast %cst_9 : f32 to vector<8x1xf32>
    %27 = arith.subf %26, %25 : vector<8x1xf32>
    %c0_10 = arith.constant 0 : index
    %c0_11 = arith.constant 0 : index
    %28 = vector.load %arg5[%c0_10, %c0_11] : memref<8x1xf32, #tpu.memory_space<vmem>>, vector<8x1xf32>
    %29 = arith.addf %28, %27 : vector<8x1xf32>
    %c0_12 = arith.constant 0 : index
    %c0_13 = arith.constant 0 : index
    %30 = vector.load %arg5[%c0_12, %c0_13] : memref<8x1xf32, #tpu.memory_space<vmem>>, vector<8x1xf32>
    tpu.vector_store %arg5[%c0_12, %c0_13], %29 {strides = array<i32>} : memref<8x1xf32, #tpu.memory_space<vmem>>, vector<8x1xf32>,
    %c0_i32_14 = arith.constant 0 : i32
    %31 = arith.cmpi eq, %arg1, %c0_i32_14 : i32
    %32 = arith.extui %31 : i1 to i32
    %c0_i32_15 = arith.constant 0 : i32
    %33 = arith.cmpi ne, %32, %c0_i32_15 : i32
    scf.if %33 {
      %c0_16 = arith.constant 0 : index
      %c0_17 = arith.constant 0 : index
      %34 = vector.load %arg5[%c0_16, %c0_17] : memref<8x1xf32, #tpu.memory_space<vmem>>, vector<8x1xf32>
      %35 = vector.shape_cast %34 : vector<8x1xf32> to vector<1x8x1xf32>
      %cst_18 = arith.constant dense<0.000000e+00> : vector<1xf32>
      %36 = vector.multi_reduction <add>, %35, %cst_18 [1, 2] : vector<1x8x1xf32> to vector<1xf32>
      %37 = vector.shape_cast %36 : vector<1xf32> to vector<1x1x1xf32>
      %38 = vector.extract %37[0, 0, 0] : f32 from vector<1x1x1xf32>
      %39 = vector.broadcast %38 : f32 to vector<1x1x1xf32>
      %c0_19 = arith.constant 0 : index
      %c0_20 = arith.constant 0 : index
      %c0_21 = arith.constant 0 : index
      %40 = vector.load %arg4[%c0_19, %c0_20, %c0_21] : memref<1x1x1xf32, #tpu.memory_space<vmem>>, vector<1x1x1xf32>
      tpu.vector_store %arg4[%c0_19, %c0_20, %c0_21], %39 {strides = array<i32>} : memref<1x1x1xf32, #tpu.memory_space<vmem>>, vector<1x1x1xf32>,
    } else {
    }
    return
  }
  func.func @transform_0(%arg0: i32, %arg1: i32) -> (i32, i32) {
    %c1_i32 = arith.constant 1 : i32
    %0 = arith.muli %arg0, %c1_i32 : i32
    %1 = arith.addi %0, %arg1 : i32
    %c0_i32 = arith.constant 0 : i32
    %2 = arith.minsi %1, %c0_i32 : i32
    %c0_i32_0 = arith.constant 0 : i32
    %c0_i32_1 = arith.constant 0 : i32
    return %2, %c0_i32_0 : i32, i32
  }
  func.func @transform_1(%arg0: i32, %arg1: i32) -> (i32, i32) {
    %c1_i32 = arith.constant 1 : i32
    %0 = arith.muli %arg0, %c1_i32 : i32
    %1 = arith.addi %0, %arg1 : i32
    %c0_i32 = arith.constant 0 : i32
    %2 = arith.minsi %1, %c0_i32 : i32
    %c0_i32_0 = arith.constant 0 : i32
    %c0_i32_1 = arith.constant 0 : i32
    return %2, %c0_i32_0 : i32, i32
  }
  func.func @transform_2(%arg0: i32, %arg1: i32) -> (i32, i32, i32) {
    %c0_i32 = arith.constant 0 : i32
    %c0_i32_0 = arith.constant 0 : i32
    %c0_i32_1 = arith.constant 0 : i32
    return %arg0, %c0_i32, %c0_i32_0 : i32, i32, i32
  }
}

</mosaic_0001>

<llo_original>
// kernel: tpu_custom_call.1
$region0: #{tpu_custom_call.1}
  #allocation0 [shape = 'u32[]', space=smem, size = 0x4, offset = 0x4, fixed_abs, tag = 'smem constant byte address 0x4 - core index']
  #allocation1 [shape = 'u32[144,128]{1,0:T(1,128)}', space=vmem, size = 0x12000, scoped, tag = 'internal scratch']
  #allocation2 [shape = 'f32[8,1]{1,0:T(8,128)}', space=vmem, size = 0x1000, scoped, tag = 'scratch operand']
  %s0 = inlined_call_operand.vmem [shape: f32[8,16], index: 0, kind: input, shape index: {}]
  %s1 = inlined_call_operand.vmem [shape: s32[8,1], index: 1, kind: input, shape index: {}]
  %s2 = inlined_call_operand.hbm [shape: f32[1,1,1], index: 2, kind: output, shape index: {}]
  %s3 = sld [smem:[#allocation0]]
  $region26: #{tpu_custom_call.1} parent=0
    _
  %s5 = ssub.s32 1, %s3
  %s6 = scalar_select 0, %s5, %s3
  $region1: #{tpu_custom_call.1} parent=0
    #allocation3 [shape = 'u8[512]{0}', space=vmem, size = 0x400, scoped, tag = 'output window, operand 0, single buffered']
    #allocation4 [shape = 's32[1]{0}', space=sflag, size = 0x4, scoped, tag = 'scoped memory for tpu_custom_call.1']
    %7 = vsyncpa [#allocation4], 0
    // Predicated region
    $region2: #{tpu_custom_call.1} parent=1 // pred_check
      _
    $region3: #{tpu_custom_call.1} parent=1 // pred_check_branch
      %9 = sbr.rel (0) target = $region5
    $region4: #{tpu_custom_call.1} parent=1 // pred_region
      %s10 = sadd.s32 0, 0
      %p11 = scmp.lt.s32.totalorder %s10, 0
      %s12 = scalar_select %p11, %s10, 0
      %p13 = scmp.lt.s32.totalorder %s12, 0
      %s14 = scalar_select %p13, %s12, 0
      %s15 = smul.addr %s14, 8
      %s16 = scalar_lea.vmem %s0, %s15
      %s17 = sadd.s32 0, 0
      %p18 = scmp.lt.s32.totalorder %s17, 0
      %s19 = scalar_select %p18, %s17, 0
    $region5: #{tpu_custom_call.1} parent=1 // pred_fallthru
      _
    // Predicated region
    $region6: #{tpu_custom_call.1} parent=1 // pred_check
      _
    $region7: #{tpu_custom_call.1} parent=1 // pred_check_branch
      %21 = sbr.rel (0) target = $region9
    $region8: #{tpu_custom_call.1} parent=1 // pred_region
      %s22 = sadd.s32 0, 0
      %p23 = scmp.lt.s32.totalorder %s22, 0
      %s24 = scalar_select %p23, %s22, 0
      %p25 = scmp.lt.s32.totalorder %s24, 0
      %s26 = scalar_select %p25, %s24, 0
      %s27 = smul.addr %s26, 8
      %s28 = scalar_lea.vmem %s1, %s27
      %s29 = sadd.s32 0, 0
      %p30 = scmp.lt.s32.totalorder %s29, 0
      %s31 = scalar_select %p30, %s29, 0
    $region9: #{tpu_custom_call.1} parent=1 // pred_fallthru
      _
    %s32 = sadd.s32 0, 0
    %p33 = scmp.lt.s32.totalorder %s32, 0
    %s34 = scalar_select %p33, %s32, 0
    %p35 = scmp.lt.s32.totalorder %s34, 0
    %s36 = scalar_select %p35, %s34, 0
    %s37 = smul.addr %s36, 8
    %s38 = scalar_lea.vmem %s0, %s37
    %s39 = sadd.s32 0, 0
    %p40 = scmp.lt.s32.totalorder %s39, 0
    %s41 = scalar_select %p40, %s39, 0
    %p42 = scmp.lt.s32.totalorder %s41, 0
    %s43 = scalar_select %p42, %s41, 0
    %s44 = smul.addr %s43, 8
    %s45 = scalar_lea.vmem %s1, %s44
    %s46 = sadd.s32 0, 0
    %p47 = scmp.lt.s32.totalorder %s46, 0
    %s48 = scalar_select %p47, %s46, 0
    %p49 = scmp.lt.s32.totalorder %s48, 0
    %s50 = scalar_select %p49, %s48, 0
    %s51 = smul.addr %s50, 8
    %s52 = scalar_lea.vmem %s0, %s51
    %s53 = sadd.s32 0, 0
    %p54 = scmp.lt.s32.totalorder %s53, 0
    %s55 = scalar_select %p54, %s53, 0
    %s56 = sadd.s32 0, 0
    %p57 = scmp.lt.s32.totalorder %s56, 0
    %s58 = scalar_select %p57, %s56, 0
    %p59 = scmp.lt.s32.totalorder %s58, 0
    %s60 = scalar_select %p59, %s58, 0
    %s61 = smul.addr %s60, 8
    %s62 = scalar_lea.vmem %s1, %s61
    %s63 = sadd.s32 0, 0
    %p64 = scmp.lt.s32.totalorder %s63, 0
    %s65 = scalar_select %p64, %s63, 0
    %p66 = scmp.eq.s32.totalorder 0, 0
    // Predicated region
    $region10: #{tpu_custom_call.1} parent=1 // pred_check
      %p67 = pneg %p66
    $region11: #{tpu_custom_call.1} parent=1 // pred_check_branch
      %69 = sbr.rel (%p67) target = $region13
    $region12: #{tpu_custom_call.1} parent=1 // pred_region
      %vm70 = vcmask 7168
      %71 = vst.msk [vmem:[#allocation2] sm:$0xff] %vm70, 0.0
    $region13: #{tpu_custom_call.1} parent=1 // pred_fallthru
      _
    %v72 = vld [vmem:[%s52] sm:$0xff]
    %v73 = vld [vmem:[%s62] sm:$0xff]
    %vm74 = vcmask 130048
    %v75 = vsel %vm74, %v72, -inf
    %76 = vmax.xlane.f32.xlu0 %v75
    %v77 = vpop.xlane.xlu0 %76
    %v78 = vsub.f32 %v72, %v77
    %v79 = vmul.f32 %v78, 1.442695
    %v80 = vpow.pop %v79
    %v81 = vsel %vm74, %v80, 0.0
    %82 = vadd.xlane.f32.xlu0 %v81
    %v83 = vpop.xlane.xlu0 %82
    %v84 = vlog2.pop %v83
    %v85 = vmul.f32 %v84, 0.6931472
    %v86 = vlaneseq
    %v87 = vand.u32 %v86, 127
    %88 = vset.pattern.permute.xlu0 0
    %89 = vperm.xlu0 %88, %v73
    %v90 = vpop.permute.xlu0 %89
    %vm91 = vcmp.eq.s32.totalorder %v87, %v90
    %v92 = vsel %vm91, %v72, -inf
    %v93 = vsel %vm74, %v92, -inf
    %94 = vmax.xlane.f32.xlu0 %v93
    %v95 = vpop.xlane.xlu0 %94
    %v96 = vsub.f32 %v95, %v77
    %v97 = vsub.f32 %v96, %v85
    %v98 = vmax.f32 %v97, -16.118095
    %v99 = vmin.f32 %v98, -1.0000001e-07
    %v100 = vsub.f32 0.0, %v99
    %v101 = vld [vmem:[#allocation2] sm:$0xff]
    %v102 = vadd.f32 %v101, %v100
    %vm103 = vcmask 7168
    %104 = vst.msk [vmem:[#allocation2] sm:$0xff] %vm103, %v102
    // Predicated region
    $region14: #{tpu_custom_call.1} parent=1 // pred_check
      %p105 = pneg %p66
    $region15: #{tpu_custom_call.1} parent=1 // pred_check_branch
      %107 = sbr.rel (%p105) target = $region17
    $region16: #{tpu_custom_call.1} parent=1 // pred_region
      %v108 = vld [vmem:[#allocation2] sm:$0xff]
      %v109 = vsel %vm103, %v108, 0.0
      %110 = vadd.xlane.f32.xlu0 %v109
      %v111 = vpop.xlane.xlu0 %110
      %v112 = vrot.slane %v111, 4
      %v113 = vadd.f32 %v111, %v112
      %v114 = vrot.slane %v113, 2
      %v115 = vadd.f32 %v113, %v114
      %v116 = vrot.slane %v115, 1
      %v117 = vadd.f32 %v115, %v116
      %s118 = vtos %v117
      %v119 = vstv %s118
      %vm120 = vcmask 0
      %121 = vst.msk [vmem:[#allocation3] sm:$0x1] %vm120, %v119
    $region17: #{tpu_custom_call.1} parent=1 // pred_fallthru
      _
    // Predicated region
    $region18: #{tpu_custom_call.1} parent=1 // pred_check
      _
    $region19: #{tpu_custom_call.1} parent=1 // pred_check_branch
      %123 = sbr.rel (0) target = $region21
    $region20: #{tpu_custom_call.1} parent=1 // pred_region
      %s125 = ssub.s32 16, 16
      %126 = vsyncadd [#allocation4], %s125
      %s128 = sshll.u32 [#allocation3], 4
      %s129 = int_to_ptr.vmem [resolvable:$true] %s128
      %131 = dma.vmem_to_hbm [thread:$0]  %s129, 16, %s2, [#allocation4]
    $region21: #{tpu_custom_call.1} parent=1 // pred_fallthru
      _
    // Predicated region
    $region22: #{tpu_custom_call.1} parent=1 // pred_check
      _
    $region23: #{tpu_custom_call.1} parent=1 // pred_check_branch
      %133 = sbr.rel (0) target = $region25
    $region24: #{tpu_custom_call.1} parent=1 // pred_region
      %134 = dma.done [#allocation4], 16
    $region25: #{tpu_custom_call.1} parent=1 // pred_fallthru
      _
    %135 = vsyncpa [#allocation4], 1

</llo_original>
